<compile_context>
chip_gen: v7x
topology: tpu7x:2x2x1
jax: 0.10.0
libtpu: 0.0.40
codegen_flags: <defaults>
</compile_context>

<pallas_src>
import jax
import jax.numpy as jnp
from jax.experimental import pallas as pl
from jax.experimental.pallas import tpu as pltpu


def _round_up(n, m):
    return ((n + m - 1) // m) * m


def _rnn_fc_kernel(x_ref, wih_ref, whh_ref, b_ref, wfc_ref, bfc_ref,
                   out_ref, xp_ref):
    """One batch-tile of the tanh-RNN recurrence plus the final FC.

    x_ref:   (T*Bt, D)  time-major flattened input tile (row = t*Bt + b), MXU dtype
    wih_ref: (D, Hp)    W_ih^T, zero-padded to Hp lanes, MXU dtype
    whh_ref: (Hp, Hp)   W_hh^T, zero-padded, MXU dtype
    b_ref:   (1, Hp)    b_ih + b_hh (f32, zero-padded)
    wfc_ref: (Hp, Cp)   W_fc^T, zero-padded, MXU dtype
    bfc_ref: (1, Cp)    b_fc (f32, zero-padded)
    out_ref: (Bt, Cp)   logits (f32, lane-dense)
    xp_ref:  (T*Bt, Hp) f32 VMEM scratch for the hoisted input projection
    """
    TB = x_ref.shape[0]
    Bt, _ = out_ref.shape
    Hp = whh_ref.shape[0]
    T = TB // Bt

    # (1) Hoisted input projection: ONE big MXU matmul, biases folded in once.
    xp_ref[...] = (
        jnp.dot(x_ref[...], wih_ref[...], preferred_element_type=jnp.float32)
        + b_ref[...])

    whh = whh_ref[...]
    mxu_dtype = whh.dtype

    # (2) Serial recurrence, fully unrolled (static T). h stays in f32; only the
    #     MXU operand is cast to the compute dtype.
    h = jnp.zeros((Bt, Hp), jnp.float32)
    for t in range(T):
        xp_t = xp_ref[pl.ds(t * Bt, Bt), :]          # sublane-aligned (Bt, Hp) slab
        h = jnp.tanh(
            xp_t + jnp.dot(h.astype(mxu_dtype), whh,
                           preferred_element_type=jnp.float32))

    # (3) FC head: single (Bt, Hp) @ (Hp, Cp) matmul, lane-dense store.
    out_ref[...] = (
        jnp.dot(h.astype(mxu_dtype), wfc_ref[...],
                preferred_element_type=jnp.float32)
        + bfc_ref[...])


def torch_model_forward(x_btd, params, *, mxu_dtype=jnp.bfloat16, b_tile=8):
    """Equivalent of TorchModel.forward(x) (inference path, y=None).

    x_btd: (B, T, D) float32, batch-first like the PyTorch module.
    params: dict with w_ih (H,D), w_hh (H,H), b_ih (H,), b_hh (H,),
            w_fc (C,H), b_fc (C,)
    returns: (B, C) float32 logits
    """
    B, T, D = x_btd.shape
    H = params["w_hh"].shape[0]
    C = params["w_fc"].shape[0]

    Hp = _round_up(H, 128)          # lane-pad hidden dim
    Cp = _round_up(C, 128)          # lane-pad classes (lane-dense output store)
    NB = pl.cdiv(B, b_tile)         # batch tiles (parallel grid axis)
    Bp = NB * b_tile                # sublane-pad batch

    # --- arrange x as (NB, T*b_tile, D), time-major inside each batch tile ----
    x_tbd = jnp.transpose(x_btd, (1, 0, 2))                       # (T, B, D)
    x_tbd = jnp.pad(x_tbd, ((0, 0), (0, Bp - B), (0, 0)))         # (T, Bp, D)
    x_tiles = x_tbd.reshape(T, NB, b_tile, D).transpose(1, 0, 2, 3)
    x2d = x_tiles.reshape(NB, T * b_tile, D).astype(mxu_dtype)

    # --- zero-pad weights to lane-dense shapes -------------------------------
    f32 = jnp.float32
    wih_p = jnp.zeros((D, Hp), f32).at[:, :H].set(params["w_ih"].T).astype(mxu_dtype)
    whh_p = jnp.zeros((Hp, Hp), f32).at[:H, :H].set(params["w_hh"].T).astype(mxu_dtype)
    wfc_p = jnp.zeros((Hp, Cp), f32).at[:H, :C].set(params["w_fc"].T).astype(mxu_dtype)
    b_p = jnp.zeros((1, Hp), f32).at[0, :H].set(params["b_ih"] + params["b_hh"])
    bfc_p = jnp.zeros((1, Cp), f32).at[0, :C].set(params["b_fc"])

    grid_spec = pltpu.PrefetchScalarGridSpec(
        num_scalar_prefetch=0,
        grid=(NB,),
        in_specs=[
            pl.BlockSpec((None, T * b_tile, D), lambda nb: (nb, 0, 0)),
            pl.BlockSpec((D, Hp), lambda nb: (0, 0)),
            pl.BlockSpec((Hp, Hp), lambda nb: (0, 0)),
            pl.BlockSpec((1, Hp), lambda nb: (0, 0)),
            pl.BlockSpec((Hp, Cp), lambda nb: (0, 0)),
            pl.BlockSpec((1, Cp), lambda nb: (0, 0)),
        ],
        out_specs=pl.BlockSpec((None, b_tile, Cp), lambda nb: (nb, 0, 0)),
        scratch_shapes=[pltpu.VMEM((T * b_tile, Hp), jnp.float32)],
    )

    out = pl.pallas_call(
        _rnn_fc_kernel,
        out_shape=jax.ShapeDtypeStruct((NB, b_tile, Cp), jnp.float32),
        grid_spec=grid_spec,
        compiler_params=pltpu.CompilerParams(
            dimension_semantics=("parallel",)),   # batch tiles → megacore on v7x
    )(x2d, wih_p, whh_p, b_p, wfc_p, bfc_p)

    return out.reshape(NB * b_tile, Cp)[:B, :C]


def init_params(key, input_size, hidden_size, num_classes):
    """Deterministic init mimicking PyTorch's uniform(-1/sqrt(H), 1/sqrt(H))."""
    ks = jax.random.split(key, 6)
    bound = 1.0 / jnp.sqrt(hidden_size)
    u = lambda k, shape: jax.random.uniform(k, shape, jnp.float32, -bound, bound)
    return {
        "w_ih": u(ks[0], (hidden_size, input_size)),
        "w_hh": u(ks[1], (hidden_size, hidden_size)),
        "b_ih": u(ks[2], (hidden_size,)),
        "b_hh": u(ks[3], (hidden_size,)),
        "w_fc": u(ks[4], (num_classes, hidden_size)),
        "b_fc": u(ks[5], (num_classes,)),
    }


def reference_forward(x_btd, params):
    """Pure-JAX f32 reference of the same forward pass (sanity check)."""
    B, T, D = x_btd.shape
    H = params["w_hh"].shape[0]
    h = jnp.zeros((B, H), jnp.float32)
    for t in range(T):
        h = jnp.tanh(x_btd[:, t, :] @ params["w_ih"].T
                     + h @ params["w_hh"].T
                     + params["b_ih"] + params["b_hh"])
    return h @ params["w_fc"].T + params["b_fc"]


if __name__ == "__main__":
    # Small shapes consistent with the module's forward: (batch, seq, input_size)
    B, T, D, H, C = 2, 8, 4, 32, 5

    key = jax.random.PRNGKey(0)
    k_x, k_p = jax.random.split(key)
    x = jax.random.normal(k_x, (B, T, D), jnp.float32)
    params = init_params(k_p, D, H, C)

    ref = reference_forward(x, params)

    # Exact-semantics check: f32 MXU operands.
    logits_f32 = jax.block_until_ready(
        torch_model_forward(x, params, mxu_dtype=jnp.float32))
    assert logits_f32.shape == (B, C)
    assert jnp.allclose(logits_f32, ref, atol=1e-4, rtol=1e-4)

    # Fast path: bf16 MXU operands, f32 accumulation & elementwise.
    logits_bf16 = jax.block_until_ready(torch_model_forward(x, params))
    assert logits_bf16.shape == (B, C)
    assert jnp.allclose(logits_bf16, ref, atol=5e-2, rtol=5e-2)

    # TODO(synk): training path (CrossEntropyLoss when y is given) is not part of
    # the hot kernel; only the inference forward (logits) is implemented here.
    print("KERNEL_OK")
</pallas_src>

<mosaic_0001>
module attributes {stable_mosaic.version = 11 : i64} {
  func.func @_rnn_fc_kernel(%arg0: i32, %arg1: memref<1x64x4xf32, #tpu.memory_space<vmem>>, %arg2: memref<4x128xf32, #tpu.memory_space<vmem>>, %arg3: memref<128x128xf32, #tpu.memory_space<vmem>>, %arg4: memref<1x128xf32, #tpu.memory_space<vmem>>, %arg5: memref<128x128xf32, #tpu.memory_space<vmem>>, %arg6: memref<1x128xf32, #tpu.memory_space<vmem>>, %arg7: memref<1x8x128xf32, #tpu.memory_space<vmem>>, %arg8: memref<64x128xf32, #tpu.memory_space<vmem>>) attributes {dimension_semantics = [#tpu.dimension_semantics<parallel>], iteration_bounds = array<i64: 1>, scalar_prefetch = 0 : i64, scratch_operands = 1 : i64, tpu.core_type = #tpu.core_type<tc>, window_params = [{transform_indices = @transform_0, window_bounds = array<i64: 1, 64, 4>}, {pipeline_mode = #tpu.pipeline_mode<synchronous>, transform_indices = @transform_1, window_bounds = array<i64: 4, 128>}, {pipeline_mode = #tpu.pipeline_mode<synchronous>, transform_indices = @transform_2, window_bounds = array<i64: 128, 128>}, {pipeline_mode = #tpu.pipeline_mode<synchronous>, transform_indices = @transform_3, window_bounds = array<i64: 1, 128>}, {pipeline_mode = #tpu.pipeline_mode<synchronous>, transform_indices = @transform_4, window_bounds = array<i64: 128, 128>}, {pipeline_mode = #tpu.pipeline_mode<synchronous>, transform_indices = @transform_5, window_bounds = array<i64: 1, 128>}, {transform_indices = @transform_6, window_bounds = array<i64: 1, 8, 128>}]} {
    %c0 = arith.constant 0 : index
    %c0_0 = arith.constant 0 : index
    %c0_1 = arith.constant 0 : index
    %0 = vector.load %arg1[%c0, %c0_0, %c0_1] : memref<1x64x4xf32, #tpu.memory_space<vmem>>, vector<1x64x4xf32>
    %1 = vector.shape_cast %0 : vector<1x64x4xf32> to vector<64x4xf32>
    %c0_2 = arith.constant 0 : index
    %c0_3 = arith.constant 0 : index
    %2 = vector.load %arg2[%c0_2, %c0_3] : memref<4x128xf32, #tpu.memory_space<vmem>>, vector<4x128xf32>
    %cst = arith.constant dense<0.000000e+00> : vector<64x128xf32>
    %3 = tpu.matmul %1, %2, %cst {dimension_numbers = #tpu.dot_dimension_numbers<[1], [0], [0], [1], [0, 0, 1, 1], [], []>} : vector<64x4xf32>, vector<4x128xf32>, vector<64x128xf32> -> vector<64x128xf32>
    %c0_4 = arith.constant 0 : index
    %c0_5 = arith.constant 0 : index
    %4 = vector.load %arg4[%c0_4, %c0_5] : memref<1x128xf32, #tpu.memory_space<vmem>>, vector<1x128xf32>
    %5 = vector.broadcast %4 : vector<1x128xf32> to vector<64x128xf32>
    %6 = arith.addf %3, %5 : vector<64x128xf32>
    %c0_6 = arith.constant 0 : index
    %c0_7 = arith.constant 0 : index
    %7 = vector.load %arg8[%c0_6, %c0_7] : memref<64x128xf32, #tpu.memory_space<vmem>>, vector<64x128xf32>
    tpu.vector_store %arg8[%c0_6, %c0_7], %6 {strides = array<i32>} : memref<64x128xf32, #tpu.memory_space<vmem>>, vector<64x128xf32>,
    %c0_8 = arith.constant 0 : index
    %c0_9 = arith.constant 0 : index
    %8 = vector.load %arg3[%c0_8, %c0_9] : memref<128x128xf32, #tpu.memory_space<vmem>>, vector<128x128xf32>
    %cst_10 = arith.constant 0.000000e+00 : f32
    %9 = vector.broadcast %cst_10 : f32 to vector<8x128xf32>
    %c0_11 = arith.constant 0 : index
    %c0_12 = arith.constant 0 : index
    %10 = vector.load %arg8[%c0_11, %c0_12] : memref<64x128xf32, #tpu.memory_space<vmem>>, vector<8x128xf32>
    %cst_13 = arith.constant dense<0.000000e+00> : vector<8x128xf32>
    %11 = tpu.matmul %9, %8, %cst_13 {dimension_numbers = #tpu.dot_dimension_numbers<[1], [0], [0], [1], [0, 0, 1, 1], [], []>} : vector<8x128xf32>, vector<128x128xf32>, vector<8x128xf32> -> vector<8x128xf32>
    %12 = arith.addf %10, %11 : vector<8x128xf32>
    %13 = math.tanh %12 : vector<8x128xf32>
    %c8 = arith.constant 8 : index
    %c0_14 = arith.constant 0 : index
    %14 = vector.load %arg8[%c8, %c0_14] : memref<64x128xf32, #tpu.memory_space<vmem>>, vector<8x128xf32>
    %cst_15 = arith.constant dense<0.000000e+00> : vector<8x128xf32>
    %15 = tpu.matmul %13, %8, %cst_15 {dimension_numbers = #tpu.dot_dimension_numbers<[1], [0], [0], [1], [0, 0, 1, 1], [], []>} : vector<8x128xf32>, vector<128x128xf32>, vector<8x128xf32> -> vector<8x128xf32>
    %16 = arith.addf %14, %15 : vector<8x128xf32>
    %17 = math.tanh %16 : vector<8x128xf32>
    %c16 = arith.constant 16 : index
    %c0_16 = arith.constant 0 : index
    %18 = vector.load %arg8[%c16, %c0_16] : memref<64x128xf32, #tpu.memory_space<vmem>>, vector<8x128xf32>
    %cst_17 = arith.constant dense<0.000000e+00> : vector<8x128xf32>
    %19 = tpu.matmul %17, %8, %cst_17 {dimension_numbers = #tpu.dot_dimension_numbers<[1], [0], [0], [1], [0, 0, 1, 1], [], []>} : vector<8x128xf32>, vector<128x128xf32>, vector<8x128xf32> -> vector<8x128xf32>
    %20 = arith.addf %18, %19 : vector<8x128xf32>
    %21 = math.tanh %20 : vector<8x128xf32>
    %c24 = arith.constant 24 : index
    %c0_18 = arith.constant 0 : index
    %22 = vector.load %arg8[%c24, %c0_18] : memref<64x128xf32, #tpu.memory_space<vmem>>, vector<8x128xf32>
    %cst_19 = arith.constant dense<0.000000e+00> : vector<8x128xf32>
    %23 = tpu.matmul %21, %8, %cst_19 {dimension_numbers = #tpu.dot_dimension_numbers<[1], [0], [0], [1], [0, 0, 1, 1], [], []>} : vector<8x128xf32>, vector<128x128xf32>, vector<8x128xf32> -> vector<8x128xf32>
    %24 = arith.addf %22, %23 : vector<8x128xf32>
    %25 = math.tanh %24 : vector<8x128xf32>
    %c32 = arith.constant 32 : index
    %c0_20 = arith.constant 0 : index
    %26 = vector.load %arg8[%c32, %c0_20] : memref<64x128xf32, #tpu.memory_space<vmem>>, vector<8x128xf32>
    %cst_21 = arith.constant dense<0.000000e+00> : vector<8x128xf32>
    %27 = tpu.matmul %25, %8, %cst_21 {dimension_numbers = #tpu.dot_dimension_numbers<[1], [0], [0], [1], [0, 0, 1, 1], [], []>} : vector<8x128xf32>, vector<128x128xf32>, vector<8x128xf32> -> vector<8x128xf32>
    %28 = arith.addf %26, %27 : vector<8x128xf32>
    %29 = math.tanh %28 : vector<8x128xf32>
    %c40 = arith.constant 40 : index
    %c0_22 = arith.constant 0 : index
    %30 = vector.load %arg8[%c40, %c0_22] : memref<64x128xf32, #tpu.memory_space<vmem>>, vector<8x128xf32>
    %cst_23 = arith.constant dense<0.000000e+00> : vector<8x128xf32>
    %31 = tpu.matmul %29, %8, %cst_23 {dimension_numbers = #tpu.dot_dimension_numbers<[1], [0], [0], [1], [0, 0, 1, 1], [], []>} : vector<8x128xf32>, vector<128x128xf32>, vector<8x128xf32> -> vector<8x128xf32>
    %32 = arith.addf %30, %31 : vector<8x128xf32>
    %33 = math.tanh %32 : vector<8x128xf32>
    %c48 = arith.constant 48 : index
    %c0_24 = arith.constant 0 : index
    %34 = vector.load %arg8[%c48, %c0_24] : memref<64x128xf32, #tpu.memory_space<vmem>>, vector<8x128xf32>
    %cst_25 = arith.constant dense<0.000000e+00> : vector<8x128xf32>
    %35 = tpu.matmul %33, %8, %cst_25 {dimension_numbers = #tpu.dot_dimension_numbers<[1], [0], [0], [1], [0, 0, 1, 1], [], []>} : vector<8x128xf32>, vector<128x128xf32>, vector<8x128xf32> -> vector<8x128xf32>
    %36 = arith.addf %34, %35 : vector<8x128xf32>
    %37 = math.tanh %36 : vector<8x128xf32>
    %c56 = arith.constant 56 : index
    %c0_26 = arith.constant 0 : index
    %38 = vector.load %arg8[%c56, %c0_26] : memref<64x128xf32, #tpu.memory_space<vmem>>, vector<8x128xf32>
    %cst_27 = arith.constant dense<0.000000e+00> : vector<8x128xf32>
    %39 = tpu.matmul %37, %8, %cst_27 {dimension_numbers = #tpu.dot_dimension_numbers<[1], [0], [0], [1], [0, 0, 1, 1], [], []>} : vector<8x128xf32>, vector<128x128xf32>, vector<8x128xf32> -> vector<8x128xf32>
    %40 = arith.addf %38, %39 : vector<8x128xf32>
    %41 = math.tanh %40 : vector<8x128xf32>
    %c0_28 = arith.constant 0 : index
    %c0_29 = arith.constant 0 : index
    %42 = vector.load %arg5[%c0_28, %c0_29] : memref<128x128xf32, #tpu.memory_space<vmem>>, vector<128x128xf32>
    %cst_30 = arith.constant dense<0.000000e+00> : vector<8x128xf32>
    %43 = tpu.matmul %41, %42, %cst_30 {dimension_numbers = #tpu.dot_dimension_numbers<[1], [0], [0], [1], [0, 0, 1, 1], [], []>} : vector<8x128xf32>, vector<128x128xf32>, vector<8x128xf32> -> vector<8x128xf32>
    %c0_31 = arith.constant 0 : index
    %c0_32 = arith.constant 0 : index
    %44 = vector.load %arg6[%c0_31, %c0_32] : memref<1x128xf32, #tpu.memory_space<vmem>>, vector<1x128xf32>
    %45 = vector.broadcast %44 : vector<1x128xf32> to vector<8x128xf32>
    %46 = arith.addf %43, %45 : vector<8x128xf32>
    %c0_33 = arith.constant 0 : index
    %c0_34 = arith.constant 0 : index
    %c0_35 = arith.constant 0 : index
    %47 = vector.load %arg7[%c0_33, %c0_34, %c0_35] : memref<1x8x128xf32, #tpu.memory_space<vmem>>, vector<1x8x128xf32>
    %48 = vector.shape_cast %47 : vector<1x8x128xf32> to vector<8x128xf32>
    %49 = vector.shape_cast %46 : vector<8x128xf32> to vector<1x8x128xf32>
    tpu.vector_store %arg7[%c0_33, %c0_34, %c0_35], %49 {strides = array<i32>} : memref<1x8x128xf32, #tpu.memory_space<vmem>>, vector<1x8x128xf32>,
    return
  }
  func.func @transform_0(%arg0: i32) -> (i32, i32, i32) {
    %c0_i32 = arith.constant 0 : i32
    %c0_i32_0 = arith.constant 0 : i32
    %c0_i32_1 = arith.constant 0 : i32
    return %arg0, %c0_i32, %c0_i32_0 : i32, i32, i32
  }
  func.func @transform_1(%arg0: i32) -> (i32, i32) {
    %c0_i32 = arith.constant 0 : i32
    %c0_i32_0 = arith.constant 0 : i32
    %c0_i32_1 = arith.constant 0 : i32
    return %c0_i32, %c0_i32_0 : i32, i32
  }
  func.func @transform_2(%arg0: i32) -> (i32, i32) {
    %c0_i32 = arith.constant 0 : i32
    %c0_i32_0 = arith.constant 0 : i32
    %c0_i32_1 = arith.constant 0 : i32
    return %c0_i32, %c0_i32_0 : i32, i32
  }
  func.func @transform_3(%arg0: i32) -> (i32, i32) {
    %c0_i32 = arith.constant 0 : i32
    %c0_i32_0 = arith.constant 0 : i32
    %c0_i32_1 = arith.constant 0 : i32
    return %c0_i32, %c0_i32_0 : i32, i32
  }
  func.func @transform_4(%arg0: i32) -> (i32, i32) {
    %c0_i32 = arith.constant 0 : i32
    %c0_i32_0 = arith.constant 0 : i32
    %c0_i32_1 = arith.constant 0 : i32
    return %c0_i32, %c0_i32_0 : i32, i32
  }
  func.func @transform_5(%arg0: i32) -> (i32, i32) {
    %c0_i32 = arith.constant 0 : i32
    %c0_i32_0 = arith.constant 0 : i32
    %c0_i32_1 = arith.constant 0 : i32
    return %c0_i32, %c0_i32_0 : i32, i32
  }
  func.func @transform_6(%arg0: i32) -> (i32, i32, i32) {
    %c0_i32 = arith.constant 0 : i32
    %c0_i32_0 = arith.constant 0 : i32
    %c0_i32_1 = arith.constant 0 : i32
    return %arg0, %c0_i32, %c0_i32_0 : i32, i32, i32
  }
}

</mosaic_0001>

<llo_original>
// kernel: tpu_custom_call.1
$region0: #{tpu_custom_call.1}
  #allocation0 [shape = 'u32[]', space=smem, size = 0x4, offset = 0x4, fixed_abs, tag = 'smem constant byte address 0x4 - core index']
  #allocation1 [shape = 'u32[144,128]{1,0:T(1,128)}', space=vmem, size = 0x12000, scoped, tag = 'internal scratch']
  #allocation2 [shape = 'f32[64,128]{1,0:T(8,128)}', space=vmem, size = 0x8000, scoped, tag = 'scratch operand']
  %s0 = inlined_call_operand.vmem [shape: f32[1,64,4], index: 0, kind: input, shape index: {}]
  %s1 = inlined_call_operand.vmem [shape: f32[4,128], index: 1, kind: input, shape index: {}]
  %s2 = inlined_call_operand.hbm [shape: f32[128,128], index: 2, kind: input, shape index: {}]
  %s3 = inlined_call_operand.vmem [shape: f32[1,128], index: 3, kind: input, shape index: {}]
  %s4 = inlined_call_operand.hbm [shape: f32[128,128], index: 4, kind: input, shape index: {}]
  %s5 = inlined_call_operand.vmem [shape: f32[1,128], index: 5, kind: input, shape index: {}]
  %s6 = inlined_call_operand.hbm [shape: f32[1,8,128], index: 6, kind: output, shape index: {}]
  %s7 = sld [smem:[#allocation0]]
  $region42: #{tpu_custom_call.1} parent=0
    _
  %s9 = ssub.s32 1, %s7
  %s10 = scalar_select 0, %s9, %s7
  $region1: #{tpu_custom_call.1} parent=0
    #allocation3 [shape = 'u8[65536]{0}', space=vmem, size = 0x10000, scoped, tag = 'input window, operand 2, single buffered']
    #allocation4 [shape = 's32[1]{0}', space=sflag, size = 0x4, scoped, tag = 'scoped memory for tpu_custom_call.1']
    #allocation5 [shape = 's32[1]{0}', space=sflag, size = 0x4, scoped, tag = 'scoped memory for tpu_custom_call.1']
    #allocation6 [shape = 'u8[65536]{0}', space=vmem, size = 0x10000, scoped, tag = 'input window, operand 4, single buffered']
    #allocation7 [shape = 's32[1]{0}', space=sflag, size = 0x4, scoped, tag = 'scoped memory for tpu_custom_call.1']
    #allocation8 [shape = 'u8[4096]{0}', space=vmem, size = 0x1000, scoped, tag = 'output window, operand 0, single buffered']
    %11 = vsyncpa [#allocation4], 0
    %12 = vsyncpa [#allocation7], 0
    %13 = vsyncpa [#allocation5], 0
    // Predicated region
    $region2: #{tpu_custom_call.1} parent=1 // pred_check
      _
    $region3: #{tpu_custom_call.1} parent=1 // pred_check_branch
      %15 = sbr.rel (0) target = $region5
    $region4: #{tpu_custom_call.1} parent=1 // pred_region
      _
    $region5: #{tpu_custom_call.1} parent=1 // pred_fallthru
      _
    // Predicated region
    $region6: #{tpu_custom_call.1} parent=1 // pred_check
      _
    $region7: #{tpu_custom_call.1} parent=1 // pred_check_branch
      %17 = sbr.rel (0) target = $region9
    $region8: #{tpu_custom_call.1} parent=1 // pred_region
      _
    $region9: #{tpu_custom_call.1} parent=1 // pred_fallthru
      _
    // Predicated region
    $region10: #{tpu_custom_call.1} parent=1 // pred_check
      _
    $region11: #{tpu_custom_call.1} parent=1 // pred_check_branch
      %19 = sbr.rel (0) target = $region13
    $region12: #{tpu_custom_call.1} parent=1 // pred_region
      %s21 = ssub.s32 2048, 2048
      %22 = vsyncadd [#allocation4], %s21
      %s23 = sshll.u32 [#allocation3], 4
      %s24 = int_to_ptr.vmem [resolvable:$true] %s23
      %29 = dma.hbm_to_vmem [thread:$0]  %s2, 2048, %s24, [#allocation4], 128, 128, 8
    $region13: #{tpu_custom_call.1} parent=1 // pred_fallthru
      _
    // Predicated region
    $region14: #{tpu_custom_call.1} parent=1 // pred_check
      _
    $region15: #{tpu_custom_call.1} parent=1 // pred_check_branch
      %31 = sbr.rel (0) target = $region17
    $region16: #{tpu_custom_call.1} parent=1 // pred_region
      _
    $region17: #{tpu_custom_call.1} parent=1 // pred_fallthru
      _
    // Predicated region
    $region18: #{tpu_custom_call.1} parent=1 // pred_check
      _
    $region19: #{tpu_custom_call.1} parent=1 // pred_check_branch
      %33 = sbr.rel (0) target = $region21
    $region20: #{tpu_custom_call.1} parent=1 // pred_region
      %s35 = ssub.s32 2048, 2048
      %36 = vsyncadd [#allocation7], %s35
      %s37 = sshll.u32 [#allocation6], 4
      %s38 = int_to_ptr.vmem [resolvable:$true] %s37
      %43 = dma.hbm_to_vmem [thread:$0]  %s4, 2048, %s38, [#allocation7], 128, 128, 8
    $region21: #{tpu_custom_call.1} parent=1 // pred_fallthru
      _
    // Predicated region
    $region22: #{tpu_custom_call.1} parent=1 // pred_check
      _
    $region23: #{tpu_custom_call.1} parent=1 // pred_check_branch
      %45 = sbr.rel (0) target = $region25
    $region24: #{tpu_custom_call.1} parent=1 // pred_region
      _
    $region25: #{tpu_custom_call.1} parent=1 // pred_fallthru
      _
    // Predicated region
    $region26: #{tpu_custom_call.1} parent=1 // pred_check
      _
    $region27: #{tpu_custom_call.1} parent=1 // pred_check_branch
      %47 = sbr.rel (0) target = $region29
    $region28: #{tpu_custom_call.1} parent=1 // pred_region
      %48 = dma.done [#allocation4], 2048
    $region29: #{tpu_custom_call.1} parent=1 // pred_fallthru
      _
    // Predicated region
    $region30: #{tpu_custom_call.1} parent=1 // pred_check
      _
    $region31: #{tpu_custom_call.1} parent=1 // pred_check_branch
      %50 = sbr.rel (0) target = $region33
    $region32: #{tpu_custom_call.1} parent=1 // pred_region
      %51 = dma.done [#allocation7], 2048
    $region33: #{tpu_custom_call.1} parent=1 // pred_fallthru
      _
    %v52 = vld [vmem:[%s0] sm:$0xff]
    %v53 = vld [vmem:[%s0 + $0x8] sm:$0xff]
    %v54 = vld [vmem:[%s0 + $0x10] sm:$0xff]
    %v55 = vld [vmem:[%s0 + $0x18] sm:$0xff]
    %v56 = vld [vmem:[%s0 + $0x20] sm:$0xff]
    %v57 = vld [vmem:[%s0 + $0x28] sm:$0xff]
    %v58 = vld [vmem:[%s0 + $0x30] sm:$0xff]
    %v59 = vld [vmem:[%s0 + $0x38] sm:$0xff]
    %v60 = vld [vmem:[%s1] sm:$0xf]
    %v61 = vld [vmem:[%s3] sm:$0x1]
    %v63 = vlaneseq
    %v64 = vshrl.u32 %v63, 7
    %v65 = vsub.s32 0, %v64
    %v66 = vrot.slane %v61, %v65
    %vm68 = vcmask 31744
    %v70 = vsel %vm68, %v52, 0
    %v73 = vsel %vm68, %v53, 0
    %v76 = vsel %vm68, %v54, 0
    %v79 = vsel %vm68, %v55, 0
    %v82 = vsel %vm68, %v56, 0
    %v85 = vsel %vm68, %v57, 0
    %v88 = vsel %vm68, %v58, 0
    %v91 = vsel %vm68, %v59, 0
    %vm93 = vcmask 1043456
    %v95 = vsel %vm93, %v60, 0
    %97 = vmatprep.subr.mxu0 0.0
    %98 = vmatpush1.msra.mxu0 %v95
    %99 = vmatprep.subr.mxu0 0.0
    %100 = vmatpush1.msra.mxu0 0.0
    %101 = vmatprep.subr.mxu0 0.0
    %102 = vmatpush1.msra.mxu0 0.0
    %103 = vmatprep.subr.mxu0 0.0
    %104 = vmatpush1.msra.mxu0 0.0
    %105 = vmatprep.subr.mxu0 0.0
    %106 = vmatpush1.msra.mxu0 0.0
    %107 = vmatprep.subr.mxu0 0.0
    %108 = vmatpush1.msra.mxu0 0.0
    %109 = vmatprep.subr.mxu0 0.0
    %110 = vmatpush1.msra.mxu0 0.0
    %111 = vmatprep.subr.mxu0 0.0
    %112 = vmatpush1.msra.mxu0 0.0
    %113 = vmatprep.subr.mxu0 0.0
    %114 = vmatpush1.msra.mxu0 0.0
    %115 = vmatprep.subr.mxu0 0.0
    %116 = vmatpush1.msra.mxu0 0.0
    %117 = vmatprep.subr.mxu0 0.0
    %118 = vmatpush1.msra.mxu0 0.0
    %119 = vmatprep.subr.mxu0 0.0
    %120 = vmatpush1.msra.mxu0 0.0
    %121 = vmatprep.subr.mxu0 0.0
    %122 = vmatpush1.msra.mxu0 0.0
    %123 = vmatprep.subr.mxu0 0.0
    %124 = vmatpush1.msra.mxu0 0.0
    %125 = vmatprep.subr.mxu0 0.0
    %126 = vmatpush1.msra.mxu0 0.0
    %127 = vmatprep.subr.mxu0 0.0
    %128 = vmatpush1.msra.mxu0 0.0
    %129 = vmatprep.subr.mxu0 0.0
    %130 = vmatpush1.msra.mxu0 0.0
    %131 = vmatprep.subr.mxu0 0.0
    %132 = vmatpush1.msra.mxu0 0.0
    %133 = vmatprep.subr.mxu0 0.0
    %134 = vmatpush1.msra.mxu0 0.0
    %135 = vmatprep.subr.mxu0 0.0
    %136 = vmatpush1.msra.mxu0 0.0
    %137 = vmatprep.subr.mxu0 0.0
    %138 = vmatpush1.msra.mxu0 0.0
    %139 = vmatprep.subr.mxu0 0.0
    %140 = vmatpush1.msra.mxu0 0.0
    %141 = vmatprep.subr.mxu0 0.0
    %142 = vmatpush1.msra.mxu0 0.0
    %143 = vmatprep.subr.mxu0 0.0
    %144 = vmatpush1.msra.mxu0 0.0
    %145 = vmatprep.subr.mxu0 0.0
    %146 = vmatpush1.msra.mxu0 0.0
    %147 = vmatprep.subr.mxu0 0.0
    %148 = vmatpush1.msra.mxu0 0.0
    %149 = vmatprep.subr.mxu0 0.0
    %150 = vmatpush1.msra.mxu0 0.0
    %151 = vmatprep.subr.mxu0 0.0
    %152 = vmatpush1.msra.mxu0 0.0
    %153 = vmatprep.subr.mxu0 0.0
    %154 = vmatpush1.msra.mxu0 0.0
    %155 = vmatprep.subr.mxu0 0.0
    %156 = vmatpush1.msra.mxu0 0.0
    %157 = vmatprep.subr.mxu0 0.0
    %158 = vmatpush1.msra.mxu0 0.0
    %159 = vmatprep.subr.mxu0 0.0
    %160 = vmatpush1.msra.mxu0 0.0
    %161 = vmatprep.mubr.f32.mxu0 0.0
    %162 = vmatmul.mubr.f32.gmra.mrb[0].mxu0 %v70
    %v163 = vpop.f32.mrb[0].mxu0
    %v164 = vadd.f32 %v66, %v163
    %v165 = vpop.f32.mrb[0].mxu0
    %166 = vmatprep.mubr.f32.mxu0 0.0
    %167 = vmatmul.mubr.f32.gmra.mrb[0].mxu0 %v73
    %v168 = vpop.f32.mrb[0].mxu0
    %v169 = vadd.f32 %v66, %v168
    %v170 = vpop.f32.mrb[0].mxu0
    %171 = vmatprep.mubr.f32.mxu0 0.0
    %172 = vmatmul.mubr.f32.gmra.mrb[0].mxu0 %v76
    %v173 = vpop.f32.mrb[0].mxu0
    %v174 = vadd.f32 %v66, %v173
    %v175 = vpop.f32.mrb[0].mxu0
    %176 = vmatprep.mubr.f32.mxu0 0.0
    %177 = vmatmul.mubr.f32.gmra.mrb[0].mxu0 %v79
    %v178 = vpop.f32.mrb[0].mxu0
    %v179 = vadd.f32 %v66, %v178
    %v180 = vpop.f32.mrb[0].mxu0
    %181 = vmatprep.mubr.f32.mxu0 0.0
    %182 = vmatmul.mubr.f32.gmra.mrb[0].mxu0 %v82
    %v183 = vpop.f32.mrb[0].mxu0
    %v184 = vadd.f32 %v66, %v183
    %v185 = vpop.f32.mrb[0].mxu0
    %186 = vmatprep.mubr.f32.mxu0 0.0
    %187 = vmatmul.mubr.f32.gmra.mrb[0].mxu0 %v85
    %v188 = vpop.f32.mrb[0].mxu0
    %v189 = vadd.f32 %v66, %v188
    %v190 = vpop.f32.mrb[0].mxu0
    %191 = vmatprep.mubr.f32.mxu0 0.0
    %192 = vmatmul.mubr.f32.gmra.mrb[0].mxu0 %v88
    %v193 = vpop.f32.mrb[0].mxu0
    %v194 = vadd.f32 %v66, %v193
    %v195 = vpop.f32.mrb[0].mxu0
    %196 = vmatprep.mubr.f32.mxu0 0.0
    %197 = vmatmul.mubr.f32.gmra.mrb[0].mxu0 %v91
    %v198 = vpop.f32.mrb[0].mxu0
    %v199 = vadd.f32 %v66, %v198
    %v200 = vpop.f32.mrb[0].mxu0
    %201 = vdwg.mxu0
    %202 = vst [vmem:[#allocation2] sm:$0xff] %v164
    %203 = vst [vmem:[#allocation2 + $0x8] sm:$0xff] %v169
    %204 = vst [vmem:[#allocation2 + $0x10] sm:$0xff] %v174
    %205 = vst [vmem:[#allocation2 + $0x18] sm:$0xff] %v179
    %206 = vst [vmem:[#allocation2 + $0x20] sm:$0xff] %v184
    %207 = vst [vmem:[#allocation2 + $0x28] sm:$0xff] %v189
    %208 = vst [vmem:[#allocation2 + $0x30] sm:$0xff] %v194
    %209 = vst [vmem:[#allocation2 + $0x38] sm:$0xff] %v199
    %v210 = vld [vmem:[#allocation3] sm:$0xff]
    %v211 = vld [vmem:[#allocation3 + $0x8] sm:$0xff]
    %v212 = vld [vmem:[#allocation3 + $0x10] sm:$0xff]
    %v213 = vld [vmem:[#allocation3 + $0x18] sm:$0xff]
    %v214 = vld [vmem:[#allocation3 + $0x20] sm:$0xff]
    %v215 = vld [vmem:[#allocation3 + $0x28] sm:$0xff]
    %v216 = vld [vmem:[#allocation3 + $0x30] sm:$0xff]
    %v217 = vld [vmem:[#allocation3 + $0x38] sm:$0xff]
    %v218 = vld [vmem:[#allocation3 + $0x40] sm:$0xff]
    %v219 = vld [vmem:[#allocation3 + $0x48] sm:$0xff]
    %v220 = vld [vmem:[#allocation3 + $0x50] sm:$0xff]
    %v221 = vld [vmem:[#allocation3 + $0x58] sm:$0xff]
    %v222 = vld [vmem:[#allocation3 + $0x60] sm:$0xff]
    %v223 = vld [vmem:[#allocation3 + $0x68] sm:$0xff]
    %v224 = vld [vmem:[#allocation3 + $0x70] sm:$0xff]
    %v225 = vld [vmem:[#allocation3 + $0x78] sm:$0xff]
    %v226 = vld [vmem:[#allocation2] sm:$0xff]
    %227 = vmatprep.subr.mxu0 0.0
    %228 = vmatpush1.msra.mxu0 %v210
    %229 = vmatprep.subr.mxu0 0.0
    %230 = vmatpush1.msra.mxu0 %v211
    %231 = vmatprep.subr.mxu0 0.0
    %232 = vmatpush1.msra.mxu0 %v212
    %233 = vmatprep.subr.mxu0 0.0
    %234 = vmatpush1.msra.mxu0 %v213
    %235 = vmatprep.subr.mxu0 0.0
    %236 = vmatpush1.msra.mxu0 %v214
    %237 = vmatprep.subr.mxu0 0.0
    %238 = vmatpush1.msra.mxu0 %v215
    %239 = vmatprep.subr.mxu0 0.0
    %240 = vmatpush1.msra.mxu0 %v216
    %241 = vmatprep.subr.mxu0 0.0
    %242 = vmatpush1.msra.mxu0 %v217
    %243 = vmatprep.subr.mxu0 0.0
    %244 = vmatpush1.msra.mxu0 %v218
    %245 = vmatprep.subr.mxu0 0.0
    %246 = vmatpush1.msra.mxu0 %v219
    %247 = vmatprep.subr.mxu0 0.0
    %248 = vmatpush1.msra.mxu0 %v220
    %249 = vmatprep.subr.mxu0 0.0
    %250 = vmatpush1.msra.mxu0 %v221
    %251 = vmatprep.subr.mxu0 0.0
    %252 = vmatpush1.msra.mxu0 %v222
    %253 = vmatprep.subr.mxu0 0.0
    %254 = vmatpush1.msra.mxu0 %v223
    %255 = vmatprep.subr.mxu0 0.0
    %256 = vmatpush1.msra.mxu0 %v224
    %257 = vmatprep.subr.mxu0 0.0
    %258 = vmatpush1.msra.mxu0 %v225
    %259 = vmatprep.subr.mxu0 0.0
    %260 = vmatpush1.msra.mxu0 0.0
    %261 = vmatprep.subr.mxu0 0.0
    %262 = vmatpush1.msra.mxu0 0.0
    %263 = vmatprep.subr.mxu0 0.0
    %264 = vmatpush1.msra.mxu0 0.0
    %265 = vmatprep.subr.mxu0 0.0
    %266 = vmatpush1.msra.mxu0 0.0
    %267 = vmatprep.subr.mxu0 0.0
    %268 = vmatpush1.msra.mxu0 0.0
    %269 = vmatprep.subr.mxu0 0.0
    %270 = vmatpush1.msra.mxu0 0.0
    %271 = vmatprep.subr.mxu0 0.0
    %272 = vmatpush1.msra.mxu0 0.0
    %273 = vmatprep.subr.mxu0 0.0
    %274 = vmatpush1.msra.mxu0 0.0
    %275 = vmatprep.subr.mxu0 0.0
    %276 = vmatpush1.msra.mxu0 0.0
    %277 = vmatprep.subr.mxu0 0.0
    %278 = vmatpush1.msra.mxu0 0.0
    %279 = vmatprep.subr.mxu0 0.0
    %280 = vmatpush1.msra.mxu0 0.0
    %281 = vmatprep.subr.mxu0 0.0
    %282 = vmatpush1.msra.mxu0 0.0
    %283 = vmatprep.subr.mxu0 0.0
    %284 = vmatpush1.msra.mxu0 0.0
    %285 = vmatprep.subr.mxu0 0.0
    %286 = vmatpush1.msra.mxu0 0.0
    %287 = vmatprep.subr.mxu0 0.0
    %288 = vmatpush1.msra.mxu0 0.0
    %289 = vmatprep.subr.mxu0 0.0
    %290 = vmatpush1.msra.mxu0 0.0
    %291 = vmatprep.mubr.f32.mxu0 0.0
    %292 = vmatmul.mubr.f32.gmra.mrb[0].mxu0 0.0
    %v293 = vpop.f32.mrb[0].mxu0
    %v294 = vadd.f32 0.0, %v293
    %v295 = vpop.f32.mrb[0].mxu0
    %296 = vdwg.mxu0
    %v297 = vadd.f32 %v226, %v294
    %v298 = vtanh.pop %v297
    %v299 = vld [vmem:[#allocation2 + $0x8] sm:$0xff]
    %300 = vmatprep.subr.mxu0 0.0
    %301 = vmatpush1.msra.mxu0 %v210
    %302 = vmatprep.subr.mxu0 0.0
    %303 = vmatpush1.msra.mxu0 %v211
    %304 = vmatprep.subr.mxu0 0.0
    %305 = vmatpush1.msra.mxu0 %v212
    %306 = vmatprep.subr.mxu0 0.0
    %307 = vmatpush1.msra.mxu0 %v213
    %308 = vmatprep.subr.mxu0 0.0
    %309 = vmatpush1.msra.mxu0 %v214
    %310 = vmatprep.subr.mxu0 0.0
    %311 = vmatpush1.msra.mxu0 %v215
    %312 = vmatprep.subr.mxu0 0.0
    %313 = vmatpush1.msra.mxu0 %v216
    %314 = vmatprep.subr.mxu0 0.0
    %315 = vmatpush1.msra.mxu0 %v217
    %316 = vmatprep.subr.mxu0 0.0
    %317 = vmatpush1.msra.mxu0 %v218
    %318 = vmatprep.subr.mxu0 0.0
    %319 = vmatpush1.msra.mxu0 %v219
    %320 = vmatprep.subr.mxu0 0.0
    %321 = vmatpush1.msra.mxu0 %v220
    %322 = vmatprep.subr.mxu0 0.0
    %323 = vmatpush1.msra.mxu0 %v221
    %324 = vmatprep.subr.mxu0 0.0
    %325 = vmatpush1.msra.mxu0 %v222
    %326 = vmatprep.subr.mxu0 0.0
    %327 = vmatpush1.msra.mxu0 %v223
    %328 = vmatprep.subr.mxu0 0.0
    %329 = vmatpush1.msra.mxu0 %v224
    %330 = vmatprep.subr.mxu0 0.0
    %331 = vmatpush1.msra.mxu0 %v225
    %332 = vmatprep.subr.mxu0 0.0
    %333 = vmatpush1.msra.mxu0 0.0
    %334 = vmatprep.subr.mxu0 0.0
    %335 = vmatpush1.msra.mxu0 0.0
    %336 = vmatprep.subr.mxu0 0.0
    %337 = vmatpush1.msra.mxu0 0.0
    %338 = vmatprep.subr.mxu0 0.0
    %339 = vmatpush1.msra.mxu0 0.0
    %340 = vmatprep.subr.mxu0 0.0
    %341 = vmatpush1.msra.mxu0 0.0
    %342 = vmatprep.subr.mxu0 0.0
    %343 = vmatpush1.msra.mxu0 0.0
    %344 = vmatprep.subr.mxu0 0.0
    %345 = vmatpush1.msra.mxu0 0.0
    %346 = vmatprep.subr.mxu0 0.0
    %347 = vmatpush1.msra.mxu0 0.0
    %348 = vmatprep.subr.mxu0 0.0
    %349 = vmatpush1.msra.mxu0 0.0
    %350 = vmatprep.subr.mxu0 0.0
    %351 = vmatpush1.msra.mxu0 0.0
    %352 = vmatprep.subr.mxu0 0.0
    %353 = vmatpush1.msra.mxu0 0.0
    %354 = vmatprep.subr.mxu0 0.0
    %355 = vmatpush1.msra.mxu0 0.0
    %356 = vmatprep.subr.mxu0 0.0
    %357 = vmatpush1.msra.mxu0 0.0
    %358 = vmatprep.subr.mxu0 0.0
    %359 = vmatpush1.msra.mxu0 0.0
    %360 = vmatprep.subr.mxu0 0.0
    %361 = vmatpush1.msra.mxu0 0.0
    %362 = vmatprep.subr.mxu0 0.0
    %363 = vmatpush1.msra.mxu0 0.0
    %364 = vmatprep.mubr.f32.mxu0 0.0
    %365 = vmatmul.mubr.f32.gmra.mrb[0].mxu0 %v298
    %v366 = vpop.f32.mrb[0].mxu0
    %v367 = vadd.f32 0.0, %v366
    %v368 = vpop.f32.mrb[0].mxu0
    %369 = vdwg.mxu0
    %v370 = vadd.f32 %v299, %v367
    %v371 = vtanh.pop %v370
    %v372 = vld [vmem:[#allocation2 + $0x10] sm:$0xff]
    %373 = vmatprep.subr.mxu0 0.0
    %374 = vmatpush1.msra.mxu0 %v210
    %375 = vmatprep.subr.mxu0 0.0
    %376 = vmatpush1.msra.mxu0 %v211
    %377 = vmatprep.subr.mxu0 0.0
    %378 = vmatpush1.msra.mxu0 %v212
    %379 = vmatprep.subr.mxu0 0.0
    %380 = vmatpush1.msra.mxu0 %v213
    %381 = vmatprep.subr.mxu0 0.0
    %382 = vmatpush1.msra.mxu0 %v214
    %383 = vmatprep.subr.mxu0 0.0
    %384 = vmatpush1.msra.mxu0 %v215
    %385 = vmatprep.subr.mxu0 0.0
    %386 = vmatpush1.msra.mxu0 %v216
    %387 = vmatprep.subr.mxu0 0.0
    %388 = vmatpush1.msra.mxu0 %v217
    %389 = vmatprep.subr.mxu0 0.0
    %390 = vmatpush1.msra.mxu0 %v218
    %391 = vmatprep.subr.mxu0 0.0
    %392 = vmatpush1.msra.mxu0 %v219
    %393 = vmatprep.subr.mxu0 0.0
    %394 = vmatpush1.msra.mxu0 %v220
    %395 = vmatprep.subr.mxu0 0.0
    %396 = vmatpush1.msra.mxu0 %v221
    %397 = vmatprep.subr.mxu0 0.0
    %398 = vmatpush1.msra.mxu0 %v222
    %399 = vmatprep.subr.mxu0 0.0
    %400 = vmatpush1.msra.mxu0 %v223
    %401 = vmatprep.subr.mxu0 0.0
    %402 = vmatpush1.msra.mxu0 %v224
    %403 = vmatprep.subr.mxu0 0.0
    %404 = vmatpush1.msra.mxu0 %v225
    %405 = vmatprep.subr.mxu0 0.0
    %406 = vmatpush1.msra.mxu0 0.0
    %407 = vmatprep.subr.mxu0 0.0
    %408 = vmatpush1.msra.mxu0 0.0
    %409 = vmatprep.subr.mxu0 0.0
    %410 = vmatpush1.msra.mxu0 0.0
    %411 = vmatprep.subr.mxu0 0.0
    %412 = vmatpush1.msra.mxu0 0.0
    %413 = vmatprep.subr.mxu0 0.0
    %414 = vmatpush1.msra.mxu0 0.0
    %415 = vmatprep.subr.mxu0 0.0
    %416 = vmatpush1.msra.mxu0 0.0
    %417 = vmatprep.subr.mxu0 0.0
    %418 = vmatpush1.msra.mxu0 0.0
    %419 = vmatprep.subr.mxu0 0.0
    %420 = vmatpush1.msra.mxu0 0.0
    %421 = vmatprep.subr.mxu0 0.0
    %422 = vmatpush1.msra.mxu0 0.0
    %423 = vmatprep.subr.mxu0 0.0
    %424 = vmatpush1.msra.mxu0 0.0
    %425 = vmatprep.subr.mxu0 0.0
    %426 = vmatpush1.msra.mxu0 0.0
    %427 = vmatprep.subr.mxu0 0.0
    %428 = vmatpush1.msra.mxu0 0.0
    %429 = vmatprep.subr.mxu0 0.0
    %430 = vmatpush1.msra.mxu0 0.0
    %431 = vmatprep.subr.mxu0 0.0
    %432 = vmatpush1.msra.mxu0 0.0
    %433 = vmatprep.subr.mxu0 0.0
    %434 = vmatpush1.msra.mxu0 0.0
    %435 = vmatprep.subr.mxu0 0.0
    %436 = vmatpush1.msra.mxu0 0.0
    %437 = vmatprep.mubr.f32.mxu0 0.0
    %438 = vmatmul.mubr.f32.gmra.mrb[0].mxu0 %v371
    %v439 = vpop.f32.mrb[0].mxu0
    %v440 = vadd.f32 0.0, %v439
    %v441 = vpop.f32.mrb[0].mxu0
    %442 = vdwg.mxu0
    %v443 = vadd.f32 %v372, %v440
    %v444 = vtanh.pop %v443
    %v445 = vld [vmem:[#allocation2 + $0x18] sm:$0xff]
    %446 = vmatprep.subr.mxu0 0.0
    %447 = vmatpush1.msra.mxu0 %v210
    %448 = vmatprep.subr.mxu0 0.0
    %449 = vmatpush1.msra.mxu0 %v211
    %450 = vmatprep.subr.mxu0 0.0
    %451 = vmatpush1.msra.mxu0 %v212
    %452 = vmatprep.subr.mxu0 0.0
    %453 = vmatpush1.msra.mxu0 %v213
    %454 = vmatprep.subr.mxu0 0.0
    %455 = vmatpush1.msra.mxu0 %v214
    %456 = vmatprep.subr.mxu0 0.0
    %457 = vmatpush1.msra.mxu0 %v215
    %458 = vmatprep.subr.mxu0 0.0
    %459 = vmatpush1.msra.mxu0 %v216
    %460 = vmatprep.subr.mxu0 0.0
    %461 = vmatpush1.msra.mxu0 %v217
    %462 = vmatprep.subr.mxu0 0.0
    %463 = vmatpush1.msra.mxu0 %v218
    %464 = vmatprep.subr.mxu0 0.0
    %465 = vmatpush1.msra.mxu0 %v219
    %466 = vmatprep.subr.mxu0 0.0
    %467 = vmatpush1.msra.mxu0 %v220
    %468 = vmatprep.subr.mxu0 0.0
    %469 = vmatpush1.msra.mxu0 %v221
    %470 = vmatprep.subr.mxu0 0.0
    %471 = vmatpush1.msra.mxu0 %v222
    %472 = vmatprep.subr.mxu0 0.0
    %473 = vmatpush1.msra.mxu0 %v223
    %474 = vmatprep.subr.mxu0 0.0
    %475 = vmatpush1.msra.mxu0 %v224
    %476 = vmatprep.subr.mxu0 0.0
    %477 = vmatpush1.msra.mxu0 %v225
    %478 = vmatprep.subr.mxu0 0.0
    %479 = vmatpush1.msra.mxu0 0.0
    %480 = vmatprep.subr.mxu0 0.0
    %481 = vmatpush1.msra.mxu0 0.0
    %482 = vmatprep.subr.mxu0 0.0
    %483 = vmatpush1.msra.mxu0 0.0
    %484 = vmatprep.subr.mxu0 0.0
    %485 = vmatpush1.msra.mxu0 0.0
    %486 = vmatprep.subr.mxu0 0.0
    %487 = vmatpush1.msra.mxu0 0.0
    %488 = vmatprep.subr.mxu0 0.0
    %489 = vmatpush1.msra.mxu0 0.0
    %490 = vmatprep.subr.mxu0 0.0
    %491 = vmatpush1.msra.mxu0 0.0
    %492 = vmatprep.subr.mxu0 0.0
    %493 = vmatpush1.msra.mxu0 0.0
    %494 = vmatprep.subr.mxu0 0.0
    %495 = vmatpush1.msra.mxu0 0.0
    %496 = vmatprep.subr.mxu0 0.0
    %497 = vmatpush1.msra.mxu0 0.0
    %498 = vmatprep.subr.mxu0 0.0
    %499 = vmatpush1.msra.mxu0 0.0
    %500 = vmatprep.subr.mxu0 0.0
    %501 = vmatpush1.msra.mxu0 0.0
    %502 = vmatprep.subr.mxu0 0.0
    %503 = vmatpush1.msra.mxu0 0.0
    %504 = vmatprep.subr.mxu0 0.0
    %505 = vmatpush1.msra.mxu0 0.0
    %506 = vmatprep.subr.mxu0 0.0
    %507 = vmatpush1.msra.mxu0 0.0
    %508 = vmatprep.subr.mxu0 0.0
    %509 = vmatpush1.msra.mxu0 0.0
    %510 = vmatprep.mubr.f32.mxu0 0.0
    %511 = vmatmul.mubr.f32.gmra.mrb[0].mxu0 %v444
    %v512 = vpop.f32.mrb[0].mxu0
    %v513 = vadd.f32 0.0, %v512
    %v514 = vpop.f32.mrb[0].mxu0
    %515 = vdwg.mxu0
    %v516 = vadd.f32 %v445, %v513
    %v517 = vtanh.pop %v516
    %v518 = vld [vmem:[#allocation2 + $0x20] sm:$0xff]
    %519 = vmatprep.subr.mxu0 0.0
    %520 = vmatpush1.msra.mxu0 %v210
    %521 = vmatprep.subr.mxu0 0.0
    %522 = vmatpush1.msra.mxu0 %v211
    %523 = vmatprep.subr.mxu0 0.0
    %524 = vmatpush1.msra.mxu0 %v212
    %525 = vmatprep.subr.mxu0 0.0
    %526 = vmatpush1.msra.mxu0 %v213
    %527 = vmatprep.subr.mxu0 0.0
    %528 = vmatpush1.msra.mxu0 %v214
    %529 = vmatprep.subr.mxu0 0.0
    %530 = vmatpush1.msra.mxu0 %v215
    %531 = vmatprep.subr.mxu0 0.0
    %532 = vmatpush1.msra.mxu0 %v216
    %533 = vmatprep.subr.mxu0 0.0
    %534 = vmatpush1.msra.mxu0 %v217
    %535 = vmatprep.subr.mxu0 0.0
    %536 = vmatpush1.msra.mxu0 %v218
    %537 = vmatprep.subr.mxu0 0.0
    %538 = vmatpush1.msra.mxu0 %v219
    %539 = vmatprep.subr.mxu0 0.0
    %540 = vmatpush1.msra.mxu0 %v220
    %541 = vmatprep.subr.mxu0 0.0
    %542 = vmatpush1.msra.mxu0 %v221
    %543 = vmatprep.subr.mxu0 0.0
    %544 = vmatpush1.msra.mxu0 %v222
    %545 = vmatprep.subr.mxu0 0.0
    %546 = vmatpush1.msra.mxu0 %v223
    %547 = vmatprep.subr.mxu0 0.0
    %548 = vmatpush1.msra.mxu0 %v224
    %549 = vmatprep.subr.mxu0 0.0
    %550 = vmatpush1.msra.mxu0 %v225
    %551 = vmatprep.subr.mxu0 0.0
    %552 = vmatpush1.msra.mxu0 0.0
    %553 = vmatprep.subr.mxu0 0.0
    %554 = vmatpush1.msra.mxu0 0.0
    %555 = vmatprep.subr.mxu0 0.0
    %556 = vmatpush1.msra.mxu0 0.0
    %557 = vmatprep.subr.mxu0 0.0
    %558 = vmatpush1.msra.mxu0 0.0
    %559 = vmatprep.subr.mxu0 0.0
    %560 = vmatpush1.msra.mxu0 0.0
    %561 = vmatprep.subr.mxu0 0.0
    %562 = vmatpush1.msra.mxu0 0.0
    %563 = vmatprep.subr.mxu0 0.0
    %564 = vmatpush1.msra.mxu0 0.0
    %565 = vmatprep.subr.mxu0 0.0
    %566 = vmatpush1.msra.mxu0 0.0
    %567 = vmatprep.subr.mxu0 0.0
    %568 = vmatpush1.msra.mxu0 0.0
    %569 = vmatprep.subr.mxu0 0.0
    %570 = vmatpush1.msra.mxu0 0.0
    %571 = vmatprep.subr.mxu0 0.0
    %572 = vmatpush1.msra.mxu0 0.0
    %573 = vmatprep.subr.mxu0 0.0
    %574 = vmatpush1.msra.mxu0 0.0
    %575 = vmatprep.subr.mxu0 0.0
    %576 = vmatpush1.msra.mxu0 0.0
    %577 = vmatprep.subr.mxu0 0.0
    %578 = vmatpush1.msra.mxu0 0.0
    %579 = vmatprep.subr.mxu0 0.0
    %580 = vmatpush1.msra.mxu0 0.0
    %581 = vmatprep.subr.mxu0 0.0
    %582 = vmatpush1.msra.mxu0 0.0
    %583 = vmatprep.mubr.f32.mxu0 0.0
    %584 = vmatmul.mubr.f32.gmra.mrb[0].mxu0 %v517
    %v585 = vpop.f32.mrb[0].mxu0
    %v586 = vadd.f32 0.0, %v585
    %v587 = vpop.f32.mrb[0].mxu0
    %588 = vdwg.mxu0
    %v589 = vadd.f32 %v518, %v586
    %v590 = vtanh.pop %v589
    %v591 = vld [vmem:[#allocation2 + $0x28] sm:$0xff]
    %592 = vmatprep.subr.mxu0 0.0
    %593 = vmatpush1.msra.mxu0 %v210
    %594 = vmatprep.subr.mxu0 0.0
    %595 = vmatpush1.msra.mxu0 %v211
    %596 = vmatprep.subr.mxu0 0.0
    %597 = vmatpush1.msra.mxu0 %v212
    %598 = vmatprep.subr.mxu0 0.0
    %599 = vmatpush1.msra.mxu0 %v213
    %600 = vmatprep.subr.mxu0 0.0
    %601 = vmatpush1.msra.mxu0 %v214
    %602 = vmatprep.subr.mxu0 0.0
    %603 = vmatpush1.msra.mxu0 %v215
    %604 = vmatprep.subr.mxu0 0.0
    %605 = vmatpush1.msra.mxu0 %v216
    %606 = vmatprep.subr.mxu0 0.0
    %607 = vmatpush1.msra.mxu0 %v217
    %608 = vmatprep.subr.mxu0 0.0
    %609 = vmatpush1.msra.mxu0 %v218
    %610 = vmatprep.subr.mxu0 0.0
    %611 = vmatpush1.msra.mxu0 %v219
    %612 = vmatprep.subr.mxu0 0.0
    %613 = vmatpush1.msra.mxu0 %v220
    %614 = vmatprep.subr.mxu0 0.0
    %615 = vmatpush1.msra.mxu0 %v221
    %616 = vmatprep.subr.mxu0 0.0
    %617 = vmatpush1.msra.mxu0 %v222
    %618 = vmatprep.subr.mxu0 0.0
    %619 = vmatpush1.msra.mxu0 %v223
    %620 = vmatprep.subr.mxu0 0.0
    %621 = vmatpush1.msra.mxu0 %v224
    %622 = vmatprep.subr.mxu0 0.0
    %623 = vmatpush1.msra.mxu0 %v225
    %624 = vmatprep.subr.mxu0 0.0
    %625 = vmatpush1.msra.mxu0 0.0
    %626 = vmatprep.subr.mxu0 0.0
    %627 = vmatpush1.msra.mxu0 0.0
    %628 = vmatprep.subr.mxu0 0.0
    %629 = vmatpush1.msra.mxu0 0.0
    %630 = vmatprep.subr.mxu0 0.0
    %631 = vmatpush1.msra.mxu0 0.0
    %632 = vmatprep.subr.mxu0 0.0
    %633 = vmatpush1.msra.mxu0 0.0
    %634 = vmatprep.subr.mxu0 0.0
    %635 = vmatpush1.msra.mxu0 0.0
    %636 = vmatprep.subr.mxu0 0.0
    %637 = vmatpush1.msra.mxu0 0.0
    %638 = vmatprep.subr.mxu0 0.0
    %639 = vmatpush1.msra.mxu0 0.0
    %640 = vmatprep.subr.mxu0 0.0
    %641 = vmatpush1.msra.mxu0 0.0
    %642 = vmatprep.subr.mxu0 0.0
    %643 = vmatpush1.msra.mxu0 0.0
    %644 = vmatprep.subr.mxu0 0.0
    %645 = vmatpush1.msra.mxu0 0.0
    %646 = vmatprep.subr.mxu0 0.0
    %647 = vmatpush1.msra.mxu0 0.0
    %648 = vmatprep.subr.mxu0 0.0
    %649 = vmatpush1.msra.mxu0 0.0
    %650 = vmatprep.subr.mxu0 0.0
    %651 = vmatpush1.msra.mxu0 0.0
    %652 = vmatprep.subr.mxu0 0.0
    %653 = vmatpush1.msra.mxu0 0.0
    %654 = vmatprep.subr.mxu0 0.0
    %655 = vmatpush1.msra.mxu0 0.0
    %656 = vmatprep.mubr.f32.mxu0 0.0
    %657 = vmatmul.mubr.f32.gmra.mrb[0].mxu0 %v590
    %v658 = vpop.f32.mrb[0].mxu0
    %v659 = vadd.f32 0.0, %v658
    %v660 = vpop.f32.mrb[0].mxu0
    %661 = vdwg.mxu0
    %v662 = vadd.f32 %v591, %v659
    %v663 = vtanh.pop %v662
    %v664 = vld [vmem:[#allocation2 + $0x30] sm:$0xff]
    %665 = vmatprep.subr.mxu0 0.0
    %666 = vmatpush1.msra.mxu0 %v210
    %667 = vmatprep.subr.mxu0 0.0
    %668 = vmatpush1.msra.mxu0 %v211
    %669 = vmatprep.subr.mxu0 0.0
    %670 = vmatpush1.msra.mxu0 %v212
    %671 = vmatprep.subr.mxu0 0.0
    %672 = vmatpush1.msra.mxu0 %v213
    %673 = vmatprep.subr.mxu0 0.0
    %674 = vmatpush1.msra.mxu0 %v214
    %675 = vmatprep.subr.mxu0 0.0
    %676 = vmatpush1.msra.mxu0 %v215
    %677 = vmatprep.subr.mxu0 0.0
    %678 = vmatpush1.msra.mxu0 %v216
    %679 = vmatprep.subr.mxu0 0.0
    %680 = vmatpush1.msra.mxu0 %v217
    %681 = vmatprep.subr.mxu0 0.0
    %682 = vmatpush1.msra.mxu0 %v218
    %683 = vmatprep.subr.mxu0 0.0
    %684 = vmatpush1.msra.mxu0 %v219
    %685 = vmatprep.subr.mxu0 0.0
    %686 = vmatpush1.msra.mxu0 %v220
    %687 = vmatprep.subr.mxu0 0.0
    %688 = vmatpush1.msra.mxu0 %v221
    %689 = vmatprep.subr.mxu0 0.0
    %690 = vmatpush1.msra.mxu0 %v222
    %691 = vmatprep.subr.mxu0 0.0
    %692 = vmatpush1.msra.mxu0 %v223
    %693 = vmatprep.subr.mxu0 0.0
    %694 = vmatpush1.msra.mxu0 %v224
    %695 = vmatprep.subr.mxu0 0.0
    %696 = vmatpush1.msra.mxu0 %v225
    %697 = vmatprep.subr.mxu0 0.0
    %698 = vmatpush1.msra.mxu0 0.0
    %699 = vmatprep.subr.mxu0 0.0
    %700 = vmatpush1.msra.mxu0 0.0
    %701 = vmatprep.subr.mxu0 0.0
    %702 = vmatpush1.msra.mxu0 0.0
    %703 = vmatprep.subr.mxu0 0.0
    %704 = vmatpush1.msra.mxu0 0.0
    %705 = vmatprep.subr.mxu0 0.0
    %706 = vmatpush1.msra.mxu0 0.0
    %707 = vmatprep.subr.mxu0 0.0
    %708 = vmatpush1.msra.mxu0 0.0
    %709 = vmatprep.subr.mxu0 0.0
    %710 = vmatpush1.msra.mxu0 0.0
    %711 = vmatprep.subr.mxu0 0.0
    %712 = vmatpush1.msra.mxu0 0.0
    %713 = vmatprep.subr.mxu0 0.0
    %714 = vmatpush1.msra.mxu0 0.0
    %715 = vmatprep.subr.mxu0 0.0
    %716 = vmatpush1.msra.mxu0 0.0
    %717 = vmatprep.subr.mxu0 0.0
    %718 = vmatpush1.msra.mxu0 0.0
    %719 = vmatprep.subr.mxu0 0.0
    %720 = vmatpush1.msra.mxu0 0.0
    %721 = vmatprep.subr.mxu0 0.0
    %722 = vmatpush1.msra.mxu0 0.0
    %723 = vmatprep.subr.mxu0 0.0
    %724 = vmatpush1.msra.mxu0 0.0
    %725 = vmatprep.subr.mxu0 0.0
    %726 = vmatpush1.msra.mxu0 0.0
    %727 = vmatprep.subr.mxu0 0.0
    %728 = vmatpush1.msra.mxu0 0.0
    %729 = vmatprep.mubr.f32.mxu0 0.0
    %730 = vmatmul.mubr.f32.gmra.mrb[0].mxu0 %v663
    %v731 = vpop.f32.mrb[0].mxu0
    %v732 = vadd.f32 0.0, %v731
    %v733 = vpop.f32.mrb[0].mxu0
    %734 = vdwg.mxu0
    %v735 = vadd.f32 %v664, %v732
    %v736 = vtanh.pop %v735
    %v737 = vld [vmem:[#allocation2 + $0x38] sm:$0xff]
    %738 = vmatprep.subr.mxu0 0.0
    %739 = vmatpush1.msra.mxu0 %v210
    %740 = vmatprep.subr.mxu0 0.0
    %741 = vmatpush1.msra.mxu0 %v211
    %742 = vmatprep.subr.mxu0 0.0
    %743 = vmatpush1.msra.mxu0 %v212
    %744 = vmatprep.subr.mxu0 0.0
    %745 = vmatpush1.msra.mxu0 %v213
    %746 = vmatprep.subr.mxu0 0.0
    %747 = vmatpush1.msra.mxu0 %v214
    %748 = vmatprep.subr.mxu0 0.0
    %749 = vmatpush1.msra.mxu0 %v215
    %750 = vmatprep.subr.mxu0 0.0
    %751 = vmatpush1.msra.mxu0 %v216
    %752 = vmatprep.subr.mxu0 0.0
    %753 = vmatpush1.msra.mxu0 %v217
    %754 = vmatprep.subr.mxu0 0.0
    %755 = vmatpush1.msra.mxu0 %v218
    %756 = vmatprep.subr.mxu0 0.0
    %757 = vmatpush1.msra.mxu0 %v219
    %758 = vmatprep.subr.mxu0 0.0
    %759 = vmatpush1.msra.mxu0 %v220
    %760 = vmatprep.subr.mxu0 0.0
    %761 = vmatpush1.msra.mxu0 %v221
    %762 = vmatprep.subr.mxu0 0.0
    %763 = vmatpush1.msra.mxu0 %v222
    %764 = vmatprep.subr.mxu0 0.0
    %765 = vmatpush1.msra.mxu0 %v223
    %766 = vmatprep.subr.mxu0 0.0
    %767 = vmatpush1.msra.mxu0 %v224
    %768 = vmatprep.subr.mxu0 0.0
    %769 = vmatpush1.msra.mxu0 %v225
    %770 = vmatprep.subr.mxu0 0.0
    %771 = vmatpush1.msra.mxu0 0.0
    %772 = vmatprep.subr.mxu0 0.0
    %773 = vmatpush1.msra.mxu0 0.0
    %774 = vmatprep.subr.mxu0 0.0
    %775 = vmatpush1.msra.mxu0 0.0
    %776 = vmatprep.subr.mxu0 0.0
    %777 = vmatpush1.msra.mxu0 0.0
    %778 = vmatprep.subr.mxu0 0.0
    %779 = vmatpush1.msra.mxu0 0.0
    %780 = vmatprep.subr.mxu0 0.0
    %781 = vmatpush1.msra.mxu0 0.0
    %782 = vmatprep.subr.mxu0 0.0
    %783 = vmatpush1.msra.mxu0 0.0
    %784 = vmatprep.subr.mxu0 0.0
    %785 = vmatpush1.msra.mxu0 0.0
    %786 = vmatprep.subr.mxu0 0.0
    %787 = vmatpush1.msra.mxu0 0.0
    %788 = vmatprep.subr.mxu0 0.0
    %789 = vmatpush1.msra.mxu0 0.0
    %790 = vmatprep.subr.mxu0 0.0
    %791 = vmatpush1.msra.mxu0 0.0
    %792 = vmatprep.subr.mxu0 0.0
    %793 = vmatpush1.msra.mxu0 0.0
    %794 = vmatprep.subr.mxu0 0.0
    %795 = vmatpush1.msra.mxu0 0.0
    %796 = vmatprep.subr.mxu0 0.0
    %797 = vmatpush1.msra.mxu0 0.0
    %798 = vmatprep.subr.mxu0 0.0
    %799 = vmatpush1.msra.mxu0 0.0
    %800 = vmatprep.subr.mxu0 0.0
    %801 = vmatpush1.msra.mxu0 0.0
    %802 = vmatprep.mubr.f32.mxu0 0.0
    %803 = vmatmul.mubr.f32.gmra.mrb[0].mxu0 %v736
    %v804 = vpop.f32.mrb[0].mxu0
    %v805 = vadd.f32 0.0, %v804
    %v806 = vpop.f32.mrb[0].mxu0
    %807 = vdwg.mxu0
    %v808 = vadd.f32 %v737, %v805
    %v809 = vtanh.pop %v808
    %v810 = vld [vmem:[#allocation6] sm:$0xff]
    %v811 = vld [vmem:[#allocation6 + $0x8] sm:$0xff]
    %v812 = vld [vmem:[#allocation6 + $0x10] sm:$0xff]
    %v813 = vld [vmem:[#allocation6 + $0x18] sm:$0xff]
    %v814 = vld [vmem:[#allocation6 + $0x20] sm:$0xff]
    %v815 = vld [vmem:[#allocation6 + $0x28] sm:$0xff]
    %v816 = vld [vmem:[#allocation6 + $0x30] sm:$0xff]
    %v817 = vld [vmem:[#allocation6 + $0x38] sm:$0xff]
    %v818 = vld [vmem:[#allocation6 + $0x40] sm:$0xff]
    %v819 = vld [vmem:[#allocation6 + $0x48] sm:$0xff]
    %v820 = vld [vmem:[#allocation6 + $0x50] sm:$0xff]
    %v821 = vld [vmem:[#allocation6 + $0x58] sm:$0xff]
    %v822 = vld [vmem:[#allocation6 + $0x60] sm:$0xff]
    %v823 = vld [vmem:[#allocation6 + $0x68] sm:$0xff]
    %v824 = vld [vmem:[#allocation6 + $0x70] sm:$0xff]
    %v825 = vld [vmem:[#allocation6 + $0x78] sm:$0xff]
    %v826 = vld [vmem:[%s5] sm:$0x1]
    %v828 = vlaneseq
    %v829 = vshrl.u32 %v828, 7
    %v830 = vsub.s32 0, %v829
    %v831 = vrot.slane %v826, %v830
    %833 = vmatprep.subr.mxu0 0.0
    %834 = vmatpush1.msra.mxu0 %v810
    %835 = vmatprep.subr.mxu0 0.0
    %836 = vmatpush1.msra.mxu0 %v811
    %837 = vmatprep.subr.mxu0 0.0
    %838 = vmatpush1.msra.mxu0 %v812
    %839 = vmatprep.subr.mxu0 0.0
    %840 = vmatpush1.msra.mxu0 %v813
    %841 = vmatprep.subr.mxu0 0.0
    %842 = vmatpush1.msra.mxu0 %v814
    %843 = vmatprep.subr.mxu0 0.0
    %844 = vmatpush1.msra.mxu0 %v815
    %845 = vmatprep.subr.mxu0 0.0
    %846 = vmatpush1.msra.mxu0 %v816
    %847 = vmatprep.subr.mxu0 0.0
    %848 = vmatpush1.msra.mxu0 %v817
    %849 = vmatprep.subr.mxu0 0.0
    %850 = vmatpush1.msra.mxu0 %v818
    %851 = vmatprep.subr.mxu0 0.0
    %852 = vmatpush1.msra.mxu0 %v819
    %853 = vmatprep.subr.mxu0 0.0
    %854 = vmatpush1.msra.mxu0 %v820
    %855 = vmatprep.subr.mxu0 0.0
    %856 = vmatpush1.msra.mxu0 %v821
    %857 = vmatprep.subr.mxu0 0.0
    %858 = vmatpush1.msra.mxu0 %v822
    %859 = vmatprep.subr.mxu0 0.0
    %860 = vmatpush1.msra.mxu0 %v823
    %861 = vmatprep.subr.mxu0 0.0
    %862 = vmatpush1.msra.mxu0 %v824
    %863 = vmatprep.subr.mxu0 0.0
    %864 = vmatpush1.msra.mxu0 %v825
    %865 = vmatprep.subr.mxu0 0.0
    %866 = vmatpush1.msra.mxu0 0.0
    %867 = vmatprep.subr.mxu0 0.0
    %868 = vmatpush1.msra.mxu0 0.0
    %869 = vmatprep.subr.mxu0 0.0
    %870 = vmatpush1.msra.mxu0 0.0
    %871 = vmatprep.subr.mxu0 0.0
    %872 = vmatpush1.msra.mxu0 0.0
    %873 = vmatprep.subr.mxu0 0.0
    %874 = vmatpush1.msra.mxu0 0.0
    %875 = vmatprep.subr.mxu0 0.0
    %876 = vmatpush1.msra.mxu0 0.0
    %877 = vmatprep.subr.mxu0 0.0
    %878 = vmatpush1.msra.mxu0 0.0
    %879 = vmatprep.subr.mxu0 0.0
    %880 = vmatpush1.msra.mxu0 0.0
    %881 = vmatprep.subr.mxu0 0.0
    %882 = vmatpush1.msra.mxu0 0.0
    %883 = vmatprep.subr.mxu0 0.0
    %884 = vmatpush1.msra.mxu0 0.0
    %885 = vmatprep.subr.mxu0 0.0
    %886 = vmatpush1.msra.mxu0 0.0
    %887 = vmatprep.subr.mxu0 0.0
    %888 = vmatpush1.msra.mxu0 0.0
    %889 = vmatprep.subr.mxu0 0.0
    %890 = vmatpush1.msra.mxu0 0.0
    %891 = vmatprep.subr.mxu0 0.0
    %892 = vmatpush1.msra.mxu0 0.0
    %893 = vmatprep.subr.mxu0 0.0
    %894 = vmatpush1.msra.mxu0 0.0
    %895 = vmatprep.subr.mxu0 0.0
    %896 = vmatpush1.msra.mxu0 0.0
    %897 = vmatprep.mubr.f32.mxu0 0.0
    %898 = vmatmul.mubr.f32.gmra.mrb[0].mxu0 %v809
    %v899 = vpop.f32.mrb[0].mxu0
    %v900 = vadd.f32 %v831, %v899
    %v901 = vpop.f32.mrb[0].mxu0
    %902 = vdwg.mxu0
    %903 = vst [vmem:[#allocation8] sm:$0xff] %v900
    // Predicated region
    $region34: #{tpu_custom_call.1} parent=1 // pred_check
      _
    $region35: #{tpu_custom_call.1} parent=1 // pred_check_branch
      %905 = sbr.rel (0) target = $region37
    $region36: #{tpu_custom_call.1} parent=1 // pred_region
      %s907 = ssub.s32 128, 128
      %908 = vsyncadd [#allocation5], %s907
      %s910 = sshll.u32 [#allocation8], 4
      %s911 = int_to_ptr.vmem [resolvable:$true] %s910
      %913 = dma.vmem_to_hbm [thread:$0]  %s911, 128, %s6, [#allocation5]
    $region37: #{tpu_custom_call.1} parent=1 // pred_fallthru
      _
    // Predicated region
    $region38: #{tpu_custom_call.1} parent=1 // pred_check
      _
    $region39: #{tpu_custom_call.1} parent=1 // pred_check_branch
      %915 = sbr.rel (0) target = $region41
    $region40: #{tpu_custom_call.1} parent=1 // pred_region
      %916 = dma.done [#allocation5], 128
    $region41: #{tpu_custom_call.1} parent=1 // pred_fallthru
      _
    %917 = vsyncpa [#allocation4], 1
    %918 = vsyncpa [#allocation7], 1
    %919 = vsyncpa [#allocation5], 1

</llo_original>
